<compile_context>
chip_gen: v5e
topology: v5e:2x2
jax: 0.10.0
libtpu: 0.0.40
codegen_flags: <defaults>
</compile_context>

<pallas_src>
import jax
import jax.numpy as jnp
from jax.experimental import pallas as pl
from jax.experimental.pallas import tpu as pltpu


def _copy_kernel(x_ref, o_ref):
    # Pure lane-dense VMEM copy; the squeeze already happened in the wrapper.
    o_ref[...] = x_ref[...]


def _pick_lanes(n):
    """Largest 'nice' multiple-of-128 last dim that divides n (None if none)."""
    for cand in (2048, 1024, 512, 256, 128):
        if n % cand == 0:
            return cand
    return None


def _pick_row_tile(rows, lanes, itemsize):
    """Row tile targeting ~2 MiB per block (keeps 2x-buffered in+out < 8 MiB)."""
    budget_rows = max(8, (2 << 20) // (lanes * itemsize))
    if rows <= budget_rows:
        return rows  # full extent: always a legal block shape
    start = min(budget_rows, rows)
    start -= start % 8
    for cand in range(start, 0, -8):
        if rows % cand == 0:
            return cand
    return rows  # fallback: whole extent (legal; only hit for awkward sizes)


def squeeze_last(x):
    """Equivalent of torch `x.squeeze(dim=-1)` for a trailing singleton axis.

    x: (B, C, T, 1) -> (B, C, T).  If the last dim is not 1, torch.squeeze is
    a no-op on that dim; we mirror that.
    """
    if x.shape[-1] != 1:
        return x  # torch semantics: squeeze on a non-singleton dim is a no-op

    B, C, T, _ = x.shape
    out_shape3 = (B, C, T)
    # Metadata-only squeeze (free): the kernel input is already 3-D / 2-D.
    x3 = x.reshape(out_shape3)

    n = B * C * T
    itemsize = jnp.dtype(x.dtype).itemsize
    lanes = _pick_lanes(n)

    if lanes is None:
        # Awkward total size: single whole-array block (block == full dims).
        return pl.pallas_call(
            _copy_kernel,
            out_shape=jax.ShapeDtypeStruct(out_shape3, x.dtype),
            grid=(1,),
            in_specs=[pl.BlockSpec((B, C, T), lambda i: (0, 0, 0))],
            out_specs=pl.BlockSpec((B, C, T), lambda i: (0, 0, 0)),
            compiler_params=pltpu.CompilerParams(
                dimension_semantics=("parallel",)
            ),
        )(x3)

    rows = n // lanes
    row_tile = _pick_row_tile(rows, lanes, itemsize)
    x2 = x3.reshape(rows, lanes)  # free, contiguous row-major view

    y2 = pl.pallas_call(
        _copy_kernel,
        out_shape=jax.ShapeDtypeStruct((rows, lanes), x.dtype),
        grid=(rows // row_tile,),
        in_specs=[pl.BlockSpec((row_tile, lanes), lambda i: (i, 0))],
        out_specs=pl.BlockSpec((row_tile, lanes), lambda i: (i, 0)),
        compiler_params=pltpu.CompilerParams(
            dimension_semantics=("parallel",)
        ),
    )(x2)
    return y2.reshape(out_shape3)


if __name__ == "__main__":
    key = jax.random.PRNGKey(0)

    # Small shape consistent with the module: (batch=2, channels=4, time=16, 1)
    x = jax.random.normal(key, (2, 4, 16, 1), dtype=jnp.float32)
    y = squeeze_last(x)
    jax.block_until_ready(y)

    ref = jnp.squeeze(x, axis=-1)
    assert y.shape == (2, 4, 16), y.shape
    assert y.dtype == x.dtype
    assert jnp.array_equal(y, ref)

    # Second small case exercising the tiled lane-dense path (N = 8 * 1024).
    x2 = jax.random.normal(jax.random.PRNGKey(1), (2, 8, 512, 1), jnp.bfloat16)
    y2 = squeeze_last(x2)
    jax.block_until_ready(y2)
    assert y2.shape == (2, 8, 512)
    assert jnp.array_equal(y2, jnp.squeeze(x2, axis=-1))

    # No-op path (non-singleton last dim) mirrors torch.squeeze semantics.
    x3 = jax.random.normal(jax.random.PRNGKey(2), (2, 4, 16, 16), jnp.float32)
    assert squeeze_last(x3) is x3

    # TODO(synk): LambdaPlus wraps an arbitrary Python callable; only the
    # squeeze(dim=-1) specialization used in timeseriesAI is implemented here.
    print("KERNEL_OK")
</pallas_src>

<mosaic_0001>
module attributes {stable_mosaic.version = 11 : i64} {
  func.func @_copy_kernel(%arg0: i32, %arg1: memref<1x128xf32, #tpu.memory_space<vmem>>, %arg2: memref<1x128xf32, #tpu.memory_space<vmem>>) attributes {dimension_semantics = [#tpu.dimension_semantics<parallel>], iteration_bounds = array<i64: 1>, scalar_prefetch = 0 : i64, scratch_operands = 0 : i64, tpu.core_type = #tpu.core_type<tc>, window_params = [{transform_indices = @transform_0, window_bounds = array<i64: 1, 128>}, {transform_indices = @transform_1, window_bounds = array<i64: 1, 128>}]} {
    %c0 = arith.constant 0 : index
    %c0_0 = arith.constant 0 : index
    %0 = vector.load %arg1[%c0, %c0_0] : memref<1x128xf32, #tpu.memory_space<vmem>>, vector<1x128xf32>
    %c0_1 = arith.constant 0 : index
    %c0_2 = arith.constant 0 : index
    %1 = vector.load %arg2[%c0_1, %c0_2] : memref<1x128xf32, #tpu.memory_space<vmem>>, vector<1x128xf32>
    tpu.vector_store %arg2[%c0_1, %c0_2], %0 {strides = array<i32>} : memref<1x128xf32, #tpu.memory_space<vmem>>, vector<1x128xf32>,
    return
  }
  func.func @transform_0(%arg0: i32) -> (i32, i32) {
    %c0_i32 = arith.constant 0 : i32
    %c0_i32_0 = arith.constant 0 : i32
    return %arg0, %c0_i32 : i32, i32
  }
  func.func @transform_1(%arg0: i32) -> (i32, i32) {
    %c0_i32 = arith.constant 0 : i32
    %c0_i32_0 = arith.constant 0 : i32
    return %arg0, %c0_i32 : i32, i32
  }
}

</mosaic_0001>

<llo_original>
// kernel: tpu_custom_call.1
$region0: #{tpu_custom_call.1}
  #allocation0 [shape = 'u32[]', space=smem, size = 0x4, offset = 0x4, fixed_abs, tag = 'smem constant byte address 0x4 - core index']
  #allocation1 [shape = 'u32[72,128]{1,0:T(1,128)}', space=vmem, size = 0x9000, scoped, tag = 'internal scratch']
  %s0 = inlined_call_operand.hbm [shape: f32[1,128], index: 0, kind: input, shape index: {}]
  %s1 = inlined_call_operand.hbm [shape: f32[1,128], index: 1, kind: output, shape index: {}]
  %s2 = sld [smem:[#allocation0]]
  $region18: #{tpu_custom_call.1} parent=0
    _
  %s4 = ssub.s32 1, %s2
  %s5 = scalar_select 0, %s4, %s2
  $region1: #{tpu_custom_call.1} parent=0
    #allocation2 [shape = 'u8[512]{0}', space=vmem, size = 0x400, scoped, tag = 'input window, operand 0, single buffered']
    #allocation3 [shape = 's32[1]{0}', space=sflag, size = 0x4, scoped, tag = 'scoped memory for tpu_custom_call.1']
    #allocation4 [shape = 's32[1]{0}', space=sflag, size = 0x4, scoped, tag = 'scoped memory for tpu_custom_call.1']
    #allocation5 [shape = 'u8[512]{0}', space=vmem, size = 0x400, scoped, tag = 'output window, operand 0, single buffered']
    %6 = vsyncpa [#allocation3], 0
    %7 = vsyncpa [#allocation4], 0
    // Predicated region
    $region2: #{tpu_custom_call.1} parent=1 // pred_check
      _
    $region3: #{tpu_custom_call.1} parent=1 // pred_check_branch
      %9 = sbr.rel (0) target = $region5
    $region4: #{tpu_custom_call.1} parent=1 // pred_region
      %11 = vsyncadd [#allocation3], 0
      %s13 = sshll.u32 %s0, 4
      %s14 = int_to_ptr.hbm [resolvable:$true] %s13
      %s15 = sshll.u32 [#allocation2], 4
      %s16 = int_to_ptr.vmem [resolvable:$true] %s15
      %18 = dma.hbm_to_vmem [thread:$0]  %s14, 16, %s16, [#allocation3]
    $region5: #{tpu_custom_call.1} parent=1 // pred_fallthru
      _
    // Predicated region
    $region6: #{tpu_custom_call.1} parent=1 // pred_check
      _
    $region7: #{tpu_custom_call.1} parent=1 // pred_check_branch
      %20 = sbr.rel (0) target = $region9
    $region8: #{tpu_custom_call.1} parent=1 // pred_region
      %22 = dma.done [#allocation3], 16
    $region9: #{tpu_custom_call.1} parent=1 // pred_fallthru
      _
    %v23 = vld [vmem:[#allocation2] sm:$0x1]
    %24 = vst [vmem:[#allocation5] sm:$0x1] %v23
    // Predicated region
    $region10: #{tpu_custom_call.1} parent=1 // pred_check
      _
    $region11: #{tpu_custom_call.1} parent=1 // pred_check_branch
      %26 = sbr.rel (0) target = $region13
    $region12: #{tpu_custom_call.1} parent=1 // pred_region
      %28 = vsyncadd [#allocation4], 0
      %s30 = sshll.u32 [#allocation5], 4
      %s31 = int_to_ptr.vmem [resolvable:$true] %s30
      %s32 = sshll.u32 %s1, 4
      %s33 = int_to_ptr.hbm [resolvable:$true] %s32
      %35 = dma.vmem_to_hbm [thread:$0]  %s31, 16, %s33, [#allocation4]
    $region13: #{tpu_custom_call.1} parent=1 // pred_fallthru
      _
    // Predicated region
    $region14: #{tpu_custom_call.1} parent=1 // pred_check
      _
    $region15: #{tpu_custom_call.1} parent=1 // pred_check_branch
      %37 = sbr.rel (0) target = $region17
    $region16: #{tpu_custom_call.1} parent=1 // pred_region
      %39 = dma.done [#allocation4], 16
    $region17: #{tpu_custom_call.1} parent=1 // pred_fallthru
      _
    %40 = vsyncpa [#allocation3], 1
    %41 = vsyncpa [#allocation4], 1

</llo_original>
